<compile_context>
chip_gen: v6e
topology: v6e:2x2x1
jax: 0.10.0
libtpu: 0.0.40
codegen_flags: <defaults>
</compile_context>

<pallas_src>
import functools

import jax
import jax.numpy as jnp
from jax import lax
from jax.experimental import pallas as pl
from jax.experimental.pallas import tpu as pltpu


def _round_up(x, m):
    return ((x + m - 1) // m) * m


def _cdiv(a, b):
    return (a + b - 1) // b


def _pad2d(a, rows, cols):
    if rows == 0 and cols == 0:
        return a
    return jnp.pad(a, ((0, rows), (0, cols)))


# ---------------------------------------------------------------------------
# Fast path: single K step (tk == padded hidden dim).
#   grid = (i, j), j fastest.  x block index (i, 0) is constant across j, so
#   the x panel stays resident in VMEM for a whole i row; there is no
#   accumulator round-trip.  ||x||^2 is a VPU reduce of the resident tile
#   (K padding is zero so it is exact); ||y||^2 is streamed as a (1, TN)
#   lane-dense block.
# ---------------------------------------------------------------------------
def _cdist_kernel_1k(x_ref, y_ref, yy_ref, o_ref, *, precision):
    x = x_ref[...]                                    # (TM, Dp)
    xf = x.astype(jnp.float32)
    xx = jnp.sum(xf * xf, axis=-1, keepdims=True)     # (TM, 1) f32
    g = lax.dot_general(                              # (TM, TN) Gram tile, MXU
        x, y_ref[...],
        dimension_numbers=(((1,), (1,)), ((), ())),   # contract hidden dim of both
        preferred_element_type=jnp.float32,
        precision=precision,
    )
    d2 = jnp.maximum(xx + yy_ref[...] - 2.0 * g, 0.0)
    o_ref[...] = jnp.sqrt(d2).astype(o_ref.dtype)


# ---------------------------------------------------------------------------
# Fallback for very large hidden dims: (i, j, k) grid, f32 VMEM accumulator,
# zero-init at k == 0, epilogue (norm expansion + sqrt) on the last k step.
# ---------------------------------------------------------------------------
def _cdist_kernel_mk(x_ref, y_ref, xx_ref, yy_ref, o_ref, acc_ref, *, precision):
    k = pl.program_id(2)

    @pl.when(k == 0)
    def _():
        acc_ref[...] = jnp.zeros_like(acc_ref)

    acc_ref[...] += lax.dot_general(
        x_ref[...], y_ref[...],
        dimension_numbers=(((1,), (1,)), ((), ())),
        preferred_element_type=jnp.float32,
        precision=precision,
    )

    @pl.when(k == pl.num_programs(2) - 1)
    def _():
        d2 = jnp.maximum(xx_ref[...] + yy_ref[...] - 2.0 * acc_ref[...], 0.0)
        o_ref[...] = jnp.sqrt(d2).astype(o_ref.dtype)


def contrastive_loss_cdist(inputs, targets, *, tm=512, tn=512, tk_max=None,
                           matmul_dtype=None, precision=None):
    """Pallas TPU torch.cdist(inputs, targets, p=2).

    inputs:  (N, D) array (f32 or bf16)
    targets: (M, D) array (f32 or bf16)
    matmul_dtype: optionally down-cast the MXU operands (e.g. jnp.bfloat16 on
        v6e/v7x for throughput); norms/accumulation stay f32.
    precision: forwarded to lax.dot_general (e.g. lax.Precision.HIGHEST).
    returns: (N, M) float32 pairwise Euclidean distances
    """
    N, D = inputs.shape
    M, Dt = targets.shape
    assert D == Dt, "hidden dims must match"

    x_mm = inputs if matmul_dtype is None else inputs.astype(matmul_dtype)
    y_mm = targets if matmul_dtype is None else targets.astype(matmul_dtype)
    itemsize = jnp.dtype(x_mm.dtype).itemsize

    # K is padded only to lane alignment -> no wasted MXU columns.
    Dp = _round_up(D, 128)
    if tk_max is None:
        tk_max = 2048 if itemsize >= 4 else 4096   # keeps panels inside v7x VMEM
    tk_max = _round_up(tk_max, 128)

    # Row / column tiles: large + lane-dense, shrunk for small problems.
    tm = min(tm, _round_up(N, 8))
    tn = min(tn, _round_up(M, 128))
    Np = _round_up(N, tm)
    Mp = _round_up(M, tn)

    # v7x has 2 TensorCores per chip: make sure the (i, j) grid exposes at
    # least 2 parallel programs when the batch allows it.
    if (Np // tm) * (Mp // tn) < 2 and N > 8:
        tm = max(8, _round_up(_cdiv(N, 2), 8))
        Np = _round_up(N, tm)

    single_k = Dp <= tk_max
    if single_k:
        tk, nk = Dp, 1
    else:
        nk = _cdiv(Dp, tk_max)
        tk = _round_up(_cdiv(Dp, nk), 128)
        Dp = tk * nk

    x_p = _pad2d(x_mm, Np - N, Dp - D)
    y_p = _pad2d(y_mm, Mp - M, Dp - D)

    # ||y||^2 once, in f32, from the original-precision targets (tiny O(M*D)).
    y_f32 = targets.astype(jnp.float32)
    yy = jnp.sum(y_f32 * y_f32, axis=-1, keepdims=True).T      # (1, M)
    yy_p = _pad2d(yy, 0, Mp - M)

    # Scoped-VMEM limit derived from the actual double-buffered working set.
    est = 2 * (tm * tk + tn * tk) * itemsize        # x/y panels, double-buffered
    est += 2 * tm * tn * 4                          # output tile, double-buffered
    est += 2 * 8 * tn * 4                           # (1, tn) norm block (sublane pad)
    if not single_k:
        est += tm * tn * 4 + 2 * tm * 128 * 4       # acc scratch + (tm,1) norm block
    vmem_limit = int(min(max(est * 3 // 2 + (4 << 20), 32 << 20), 56 << 20))

    if single_k:
        out_p = pl.pallas_call(
            functools.partial(_cdist_kernel_1k, precision=precision),
            out_shape=jax.ShapeDtypeStruct((Np, Mp), jnp.float32),
            grid_spec=pltpu.PrefetchScalarGridSpec(
                num_scalar_prefetch=0,
                grid=(Np // tm, Mp // tn),
                in_specs=[
                    pl.BlockSpec((tm, Dp), lambda i, j: (i, 0)),   # x: resident per i row
                    pl.BlockSpec((tn, Dp), lambda i, j: (j, 0)),   # y panel
                    pl.BlockSpec((1, tn), lambda i, j: (0, j)),    # ||y||^2
                ],
                out_specs=pl.BlockSpec((tm, tn), lambda i, j: (i, j)),
            ),
            compiler_params=pltpu.CompilerParams(
                dimension_semantics=("parallel", "parallel"),
                vmem_limit_bytes=vmem_limit,
            ),
        )(x_p, y_p, yy_p)
    else:
        x_f32 = inputs.astype(jnp.float32)
        xx = jnp.sum(x_f32 * x_f32, axis=-1, keepdims=True)     # (N, 1)
        xx_p = _pad2d(xx, Np - N, 0)
        out_p = pl.pallas_call(
            functools.partial(_cdist_kernel_mk, precision=precision),
            out_shape=jax.ShapeDtypeStruct((Np, Mp), jnp.float32),
            grid_spec=pltpu.PrefetchScalarGridSpec(
                num_scalar_prefetch=0,
                grid=(Np // tm, Mp // tn, nk),
                in_specs=[
                    pl.BlockSpec((tm, tk), lambda i, j, k: (i, k)),   # x
                    pl.BlockSpec((tn, tk), lambda i, j, k: (j, k)),   # y
                    pl.BlockSpec((tm, 1), lambda i, j, k: (i, 0)),    # ||x||^2
                    pl.BlockSpec((1, tn), lambda i, j, k: (0, j)),    # ||y||^2
                ],
                out_specs=pl.BlockSpec((tm, tn), lambda i, j, k: (i, j)),
                scratch_shapes=[pltpu.VMEM((tm, tn), jnp.float32)],
            ),
            compiler_params=pltpu.CompilerParams(
                dimension_semantics=("parallel", "parallel", "arbitrary"),
                vmem_limit_bytes=vmem_limit,
            ),
        )(x_p, y_p, xx_p, yy_p)

    return out_p[:N, :M]


if __name__ == "__main__":
    key = jax.random.PRNGKey(0)
    k1, k2, k3, k4 = jax.random.split(key, 4)

    # SimCSE-style: a batch of sentence embeddings vs. target embeddings.
    N, M, D = 8, 8, 32
    inputs = jax.random.normal(k1, (N, D), dtype=jnp.float32)
    targets = jax.random.normal(k2, (M, D), dtype=jnp.float32)

    out = contrastive_loss_cdist(inputs, targets)
    out = jax.block_until_ready(out)

    ref = jnp.sqrt(
        jnp.maximum(
            jnp.sum((inputs[:, None, :] - targets[None, :, :]) ** 2, axis=-1), 0.0
        )
    )
    assert out.shape == (N, M)
    assert jnp.allclose(out, ref, atol=1e-4, rtol=1e-4), "mismatch vs reference (small)"

    # Second check: non-multiple-of-128 M, larger hidden dim, >=2-program grid
    # (exercises padding, the resident-x single-K path and the i-axis split).
    N2, M2, D2 = 16, 24, 256
    x2 = jax.random.normal(k3, (N2, D2), dtype=jnp.float32)
    y2 = jax.random.normal(k4, (M2, D2), dtype=jnp.float32)
    out2 = jax.block_until_ready(contrastive_loss_cdist(x2, y2))
    ref2 = jnp.sqrt(
        jnp.maximum(jnp.sum((x2[:, None, :] - y2[None, :, :]) ** 2, axis=-1), 0.0)
    )
    assert out2.shape == (N2, M2)
    assert jnp.allclose(out2, ref2, atol=2e-3, rtol=2e-3), "mismatch vs reference (padded)"

    print("KERNEL_OK")
</pallas_src>

<mosaic_0001>
module attributes {stable_mosaic.version = 11 : i64} {
  func.func @_cdist_kernel_1k(%arg0: i32, %arg1: i32, %arg2: memref<8x128xf32, #tpu.memory_space<vmem>>, %arg3: memref<128x128xf32, #tpu.memory_space<vmem>>, %arg4: memref<1x128xf32, #tpu.memory_space<vmem>>, %arg5: memref<8x128xf32, #tpu.memory_space<vmem>>) attributes {dimension_semantics = [#tpu.dimension_semantics<parallel>, #tpu.dimension_semantics<parallel>], iteration_bounds = array<i64: 1, 1>, scalar_prefetch = 0 : i64, scratch_operands = 0 : i64, tpu.core_type = #tpu.core_type<tc>, window_params = [{transform_indices = @transform_0, window_bounds = array<i64: 8, 128>}, {transform_indices = @transform_1, window_bounds = array<i64: 128, 128>}, {transform_indices = @transform_2, window_bounds = array<i64: 1, 128>}, {transform_indices = @transform_3, window_bounds = array<i64: 8, 128>}]} {
    %c0 = arith.constant 0 : index
    %c0_0 = arith.constant 0 : index
    %0 = vector.load %arg2[%c0, %c0_0] : memref<8x128xf32, #tpu.memory_space<vmem>>, vector<8x128xf32>
    %1 = arith.mulf %0, %0 : vector<8x128xf32>
    %cst = arith.constant dense<0.000000e+00> : vector<8xf32>
    %2 = vector.multi_reduction <add>, %1, %cst [1] : vector<8x128xf32> to vector<8xf32>
    %3 = vector.shape_cast %2 : vector<8xf32> to vector<8x1xf32>
    %c0_1 = arith.constant 0 : index
    %c0_2 = arith.constant 0 : index
    %4 = vector.load %arg3[%c0_1, %c0_2] : memref<128x128xf32, #tpu.memory_space<vmem>>, vector<128x128xf32>
    %cst_3 = arith.constant dense<0.000000e+00> : vector<8x128xf32>
    %5 = tpu.matmul %0, %4, %cst_3 {dimension_numbers = #tpu.dot_dimension_numbers<[1], [1], [0], [0], [0, 0, 1, 0], [], []>} : vector<8x128xf32>, vector<128x128xf32>, vector<8x128xf32> -> vector<8x128xf32>
    %c0_4 = arith.constant 0 : index
    %c0_5 = arith.constant 0 : index
    %6 = vector.load %arg4[%c0_4, %c0_5] : memref<1x128xf32, #tpu.memory_space<vmem>>, vector<1x128xf32>
    %7 = vector.broadcast %3 : vector<8x1xf32> to vector<8x128xf32>
    %8 = vector.broadcast %6 : vector<1x128xf32> to vector<8x128xf32>
    %9 = arith.addf %7, %8 : vector<8x128xf32>
    %cst_6 = arith.constant 2.000000e+00 : f32
    %10 = vector.broadcast %cst_6 : f32 to vector<8x128xf32>
    %11 = arith.mulf %10, %5 : vector<8x128xf32>
    %12 = arith.subf %9, %11 : vector<8x128xf32>
    %cst_7 = arith.constant 0.000000e+00 : f32
    %13 = vector.broadcast %cst_7 : f32 to vector<8x128xf32>
    %14 = arith.maximumf %12, %13 : vector<8x128xf32>
    %15 = math.sqrt %14 : vector<8x128xf32>
    %c0_8 = arith.constant 0 : index
    %c0_9 = arith.constant 0 : index
    %16 = vector.load %arg5[%c0_8, %c0_9] : memref<8x128xf32, #tpu.memory_space<vmem>>, vector<8x128xf32>
    tpu.vector_store %arg5[%c0_8, %c0_9], %15 {strides = array<i32>} : memref<8x128xf32, #tpu.memory_space<vmem>>, vector<8x128xf32>,
    return
  }
  func.func @transform_0(%arg0: i32, %arg1: i32) -> (i32, i32) {
    %c0_i32 = arith.constant 0 : i32
    %c0_i32_0 = arith.constant 0 : i32
    return %arg0, %c0_i32 : i32, i32
  }
  func.func @transform_1(%arg0: i32, %arg1: i32) -> (i32, i32) {
    %c0_i32 = arith.constant 0 : i32
    %c0_i32_0 = arith.constant 0 : i32
    return %arg1, %c0_i32 : i32, i32
  }
  func.func @transform_2(%arg0: i32, %arg1: i32) -> (i32, i32) {
    %c0_i32 = arith.constant 0 : i32
    %c0_i32_0 = arith.constant 0 : i32
    return %c0_i32, %arg1 : i32, i32
  }
  func.func @transform_3(%arg0: i32, %arg1: i32) -> (i32, i32) {
    %c0_i32 = arith.constant 0 : i32
    return %arg0, %arg1 : i32, i32
  }
}

</mosaic_0001>

<llo_original>
// kernel: tpu_custom_call.1
$region0: #{tpu_custom_call.1}
  #allocation0 [shape = 'u32[]', space=smem, size = 0x4, offset = 0x4, fixed_abs, tag = 'smem constant byte address 0x4 - core index']
  #allocation1 [shape = 'u32[144,128]{1,0:T(1,128)}', space=vmem, size = 0x12000, scoped, tag = 'internal scratch']
  %s0 = inlined_call_operand.hbm [shape: f32[8,128], index: 0, kind: input, shape index: {}]
  %s1 = inlined_call_operand.hbm [shape: f32[128,128], index: 1, kind: input, shape index: {}]
  %s2 = inlined_call_operand.vmem [shape: f32[1,128], index: 2, kind: input, shape index: {}]
  %s3 = inlined_call_operand.hbm [shape: f32[8,128], index: 3, kind: output, shape index: {}]
  %s4 = sld [smem:[#allocation0]]
  $region30: #{tpu_custom_call.1} parent=0
    _
  %s6 = ssub.s32 1, %s4
  %s7 = scalar_select 0, %s6, %s4
  $region1: #{tpu_custom_call.1} parent=0
    #allocation2 [shape = 'u8[4096]{0}', space=vmem, size = 0x1000, scoped, tag = 'input window, operand 0, single buffered']
    #allocation3 [shape = 's32[1]{0}', space=sflag, size = 0x4, scoped, tag = 'scoped memory for tpu_custom_call.1']
    #allocation4 [shape = 's32[1]{0}', space=sflag, size = 0x4, scoped, tag = 'scoped memory for tpu_custom_call.1']
    #allocation5 [shape = 'u8[65536]{0}', space=vmem, size = 0x10000, scoped, tag = 'input window, operand 1, single buffered']
    #allocation6 [shape = 's32[1]{0}', space=sflag, size = 0x4, scoped, tag = 'scoped memory for tpu_custom_call.1']
    #allocation7 [shape = 'u8[4096]{0}', space=vmem, size = 0x1000, scoped, tag = 'output window, operand 0, single buffered']
    %8 = vsyncpa [#allocation3], 0
    %9 = vsyncpa [#allocation6], 0
    %10 = vsyncpa [#allocation4], 0
    // Predicated region
    $region2: #{tpu_custom_call.1} parent=1 // pred_check
      _
    $region3: #{tpu_custom_call.1} parent=1 // pred_check_branch
      %12 = sbr.rel (0) target = $region5
    $region4: #{tpu_custom_call.1} parent=1 // pred_region
      %s14 = ssub.s32 128, 128
      %15 = vsyncadd [#allocation3], %s14
      %s17 = sshll.u32 [#allocation2], 4
      %s18 = int_to_ptr.vmem [resolvable:$true] %s17
      %20 = dma.hbm_to_vmem [thread:$0]  %s0, 128, %s18, [#allocation3]
    $region5: #{tpu_custom_call.1} parent=1 // pred_fallthru
      _
    // Predicated region
    $region6: #{tpu_custom_call.1} parent=1 // pred_check
      _
    $region7: #{tpu_custom_call.1} parent=1 // pred_check_branch
      %22 = sbr.rel (0) target = $region9
    $region8: #{tpu_custom_call.1} parent=1 // pred_region
      %s24 = ssub.s32 2048, 2048
      %25 = vsyncadd [#allocation6], %s24
      %s26 = sshll.u32 [#allocation5], 4
      %s27 = int_to_ptr.vmem [resolvable:$true] %s26
      %32 = dma.hbm_to_vmem [thread:$0]  %s1, 2048, %s27, [#allocation6], 128, 128, 8
    $region9: #{tpu_custom_call.1} parent=1 // pred_fallthru
      _
    // Predicated region
    $region10: #{tpu_custom_call.1} parent=1 // pred_check
      _
    $region11: #{tpu_custom_call.1} parent=1 // pred_check_branch
      %34 = sbr.rel (0) target = $region13
    $region12: #{tpu_custom_call.1} parent=1 // pred_region
      _
    $region13: #{tpu_custom_call.1} parent=1 // pred_fallthru
      _
    // Predicated region
    $region14: #{tpu_custom_call.1} parent=1 // pred_check
      _
    $region15: #{tpu_custom_call.1} parent=1 // pred_check_branch
      %36 = sbr.rel (0) target = $region17
    $region16: #{tpu_custom_call.1} parent=1 // pred_region
      %37 = dma.done [#allocation3], 128
    $region17: #{tpu_custom_call.1} parent=1 // pred_fallthru
      _
    // Predicated region
    $region18: #{tpu_custom_call.1} parent=1 // pred_check
      _
    $region19: #{tpu_custom_call.1} parent=1 // pred_check_branch
      %39 = sbr.rel (0) target = $region21
    $region20: #{tpu_custom_call.1} parent=1 // pred_region
      %40 = dma.done [#allocation6], 2048
    $region21: #{tpu_custom_call.1} parent=1 // pred_fallthru
      _
    %v41 = vld [vmem:[#allocation2] sm:$0xff]
    %v42 = vmul.f32 %v41, %v41
    %43 = vadd.xlane.f32.xlu0 %v42
    %v44 = vpop.xlane.xlu0 %43
    %v45 = vld [vmem:[#allocation5] sm:$0xff]
    %v46 = vld [vmem:[#allocation5 + $0x8] sm:$0xff]
    %v47 = vld [vmem:[#allocation5 + $0x10] sm:$0xff]
    %v48 = vld [vmem:[#allocation5 + $0x18] sm:$0xff]
    %v49 = vld [vmem:[#allocation5 + $0x20] sm:$0xff]
    %v50 = vld [vmem:[#allocation5 + $0x28] sm:$0xff]
    %v51 = vld [vmem:[#allocation5 + $0x30] sm:$0xff]
    %v52 = vld [vmem:[#allocation5 + $0x38] sm:$0xff]
    %v53 = vld [vmem:[#allocation5 + $0x40] sm:$0xff]
    %v54 = vld [vmem:[#allocation5 + $0x48] sm:$0xff]
    %v55 = vld [vmem:[#allocation5 + $0x50] sm:$0xff]
    %v56 = vld [vmem:[#allocation5 + $0x58] sm:$0xff]
    %v57 = vld [vmem:[#allocation5 + $0x60] sm:$0xff]
    %v58 = vld [vmem:[#allocation5 + $0x68] sm:$0xff]
    %v59 = vld [vmem:[#allocation5 + $0x70] sm:$0xff]
    %v60 = vld [vmem:[#allocation5 + $0x78] sm:$0xff]
    %61 = vmatprep.subr.mxu0 0.0
    %62 = vmatpush1.xpose.msra.mxu0 %v60
    %63 = vmatprep.subr.mxu0 0.0
    %64 = vmatpush1.xpose.msra.mxu0 %v59
    %65 = vmatprep.subr.mxu0 0.0
    %66 = vmatpush1.xpose.msra.mxu0 %v58
    %67 = vmatprep.subr.mxu0 0.0
    %68 = vmatpush1.xpose.msra.mxu0 %v57
    %69 = vmatprep.subr.mxu0 0.0
    %70 = vmatpush1.xpose.msra.mxu0 %v56
    %71 = vmatprep.subr.mxu0 0.0
    %72 = vmatpush1.xpose.msra.mxu0 %v55
    %73 = vmatprep.subr.mxu0 0.0
    %74 = vmatpush1.xpose.msra.mxu0 %v54
    %75 = vmatprep.subr.mxu0 0.0
    %76 = vmatpush1.xpose.msra.mxu0 %v53
    %77 = vmatprep.subr.mxu0 0.0
    %78 = vmatpush1.xpose.msra.mxu0 %v52
    %79 = vmatprep.subr.mxu0 0.0
    %80 = vmatpush1.xpose.msra.mxu0 %v51
    %81 = vmatprep.subr.mxu0 0.0
    %82 = vmatpush1.xpose.msra.mxu0 %v50
    %83 = vmatprep.subr.mxu0 0.0
    %84 = vmatpush1.xpose.msra.mxu0 %v49
    %85 = vmatprep.subr.mxu0 0.0
    %86 = vmatpush1.xpose.msra.mxu0 %v48
    %87 = vmatprep.subr.mxu0 0.0
    %88 = vmatpush1.xpose.msra.mxu0 %v47
    %89 = vmatprep.subr.mxu0 0.0
    %90 = vmatpush1.xpose.msra.mxu0 %v46
    %91 = vmatprep.subr.mxu0 0.0
    %92 = vmatpush1.xpose.msra.mxu0 %v45
    %93 = vmatprep.subr.mxu0 0.0
    %94 = vmatpush2.xpose.msra.mxu0 0.0
    %95 = vmatprep.subr.mxu0 0.0
    %96 = vmatpush2.xpose.msra.mxu0 0.0
    %97 = vmatprep.subr.mxu0 0.0
    %98 = vmatpush2.xpose.msra.mxu0 0.0
    %99 = vmatprep.subr.mxu0 0.0
    %100 = vmatpush2.xpose.msra.mxu0 0.0
    %101 = vmatprep.subr.mxu0 0.0
    %102 = vmatpush2.xpose.msra.mxu0 0.0
    %103 = vmatprep.subr.mxu0 0.0
    %104 = vmatpush2.xpose.msra.mxu0 0.0
    %105 = vmatprep.subr.mxu0 0.0
    %106 = vmatpush2.xpose.msra.mxu0 0.0
    %107 = vmatprep.subr.mxu0 0.0
    %108 = vmatpush2.xpose.msra.mxu0 0.0
    %109 = vmatprep.subr.mxu0 0.0
    %110 = vmatpush2.xpose.msra.mxu0 0.0
    %111 = vmatprep.subr.mxu0 0.0
    %112 = vmatpush2.xpose.msra.mxu0 0.0
    %113 = vmatprep.subr.mxu0 0.0
    %114 = vmatpush2.xpose.msra.mxu0 0.0
    %115 = vmatprep.subr.mxu0 0.0
    %116 = vmatpush2.xpose.msra.mxu0 0.0
    %117 = vmatprep.subr.mxu0 0.0
    %118 = vmatpush2.xpose.msra.mxu0 0.0
    %119 = vmatprep.subr.mxu0 0.0
    %120 = vmatpush2.xpose.msra.mxu0 0.0
    %121 = vmatprep.subr.mxu0 0.0
    %122 = vmatpush2.xpose.msra.mxu0 0.0
    %123 = vmatprep.subr.mxu0 0.0
    %124 = vmatpush2.xpose.msra.mxu0 0.0
    %125 = vmatprep.mubr.f32.mxu0 0.0
    %126 = vmatmul.mubr.f32.gmra.mxu0 %v41
    %v127 = vpop.f32.mrf.mxu0
    %v128 = vadd.f32 0.0, %v127
    %v129 = vpop.f32.mrf.mxu0
    %130 = vdwg.mxu0
    %v131 = vld [vmem:[%s2] sm:$0x1]
    %v133 = vlaneseq
    %v134 = vshrl.u32 %v133, 7
    %v135 = vsub.s32 0, %v134
    %v136 = vrot.slane %v131, %v135
    %v138 = vadd.f32 %v44, %v136
    %v139 = vmul.f32 %v128, 2.0
    %v140 = vsub.f32 %v138, %v139
    %v141 = vmax.f32 %v140, 0.0
    %v142 = vrsqrt.pop %v141
    %v143 = vmul.f32 %v141, %v142
    %vm144 = vcmp.eq.f32.partialorder %v141, inf
    %v145 = vsel %vm144, %v141, %v143
    %vm146 = vcmp.eq.f32.partialorder %v141, 0.0
    %v147 = vand.u32 %v141, 2147483648
    %v148 = vsel %vm146, %v147, %v145
    %149 = vst [vmem:[#allocation7] sm:$0xff] %v148
    // Predicated region
    $region22: #{tpu_custom_call.1} parent=1 // pred_check
      _
    $region23: #{tpu_custom_call.1} parent=1 // pred_check_branch
      %151 = sbr.rel (0) target = $region25
    $region24: #{tpu_custom_call.1} parent=1 // pred_region
      %s153 = ssub.s32 128, 128
      %154 = vsyncadd [#allocation4], %s153
      %s156 = sshll.u32 [#allocation7], 4
      %s157 = int_to_ptr.vmem [resolvable:$true] %s156
      %159 = dma.vmem_to_hbm [thread:$0]  %s157, 128, %s3, [#allocation4]
    $region25: #{tpu_custom_call.1} parent=1 // pred_fallthru
      _
    // Predicated region
    $region26: #{tpu_custom_call.1} parent=1 // pred_check
      _
    $region27: #{tpu_custom_call.1} parent=1 // pred_check_branch
      %161 = sbr.rel (0) target = $region29
    $region28: #{tpu_custom_call.1} parent=1 // pred_region
      %162 = dma.done [#allocation4], 128
    $region29: #{tpu_custom_call.1} parent=1 // pred_fallthru
      _
    %163 = vsyncpa [#allocation3], 1
    %164 = vsyncpa [#allocation6], 1
    %165 = vsyncpa [#allocation4], 1

</llo_original>
